<compile_context>
chip_gen: v6e
topology: v6e:2x2x1
jax: 0.10.0
libtpu: 0.0.40
codegen_flags: <defaults>
</compile_context>

<pallas_src>
import jax
import jax.numpy as jnp
from jax.experimental import pallas as pl
from jax.experimental.pallas import tpu as pltpu


TILE_B = 128   # max rows per grid step
C_PAD = 128    # pad class dim to a full lane width -> lane-dense output stores


def _round_up(n, m):
    return (n + m - 1) // m * m


def mlp_kernel(x_ref, w1_ref, b1_ref, w2_ref, b2_ref, o_ref):
    # x_ref:  (tile_b, D)      bf16  (pipelined over the batch grid axis)
    # w1_ref: (D, D)           bf16  (resident across grid steps)
    # b1_ref: (1, D)           f32
    # w2_ref: (D, C_PAD)       bf16  (zero-padded beyond the real class count)
    # b2_ref: (1, C_PAD)       f32   (zero-padded)
    # o_ref:  (tile_b, C_PAD)  f32
    h = jnp.dot(x_ref[...], w1_ref[...],
                preferred_element_type=jnp.float32) + b1_ref[...]
    h = jnp.maximum(h, 0.0)                                   # ReLU, f32 on VPU
    logits = jnp.dot(h.astype(jnp.bfloat16), w2_ref[...],
                     preferred_element_type=jnp.float32) + b2_ref[...]
    o_ref[...] = jax.nn.sigmoid(logits).astype(o_ref.dtype)   # exp lowers to EUP


def mlp_forward(x, w1, b1, w2, b2):
    """sigmoid(relu(x @ w1 + b1) @ w2 + b2) via a batch-tiled Pallas kernel."""
    B, D = x.shape
    C = w2.shape[1]

    # ---- host-side layout prep: pad batch/class dims, bf16 MXU operands ----
    # Small batches: one grid step of round_up(B, 8) rows (8-sublane aligned).
    # Large batches: TILE_B rows/step.
    tile_b = min(TILE_B, _round_up(max(B, 1), 8))
    b_pad = _round_up(max(B, 1), tile_b)
    c_pad = _round_up(max(C, 1), C_PAD)

    x_b = x.astype(jnp.bfloat16)
    x_p = x_b if b_pad == B else jnp.zeros((b_pad, D), jnp.bfloat16).at[:B].set(x_b)
    w1_b = w1.astype(jnp.bfloat16)
    w2_p = jnp.zeros((D, c_pad), jnp.bfloat16).at[:, :C].set(w2.astype(jnp.bfloat16))
    b1_f = b1.reshape(1, D).astype(jnp.float32)
    b2_p = jnp.zeros((1, c_pad), jnp.float32).at[:, :C].set(
        b2.reshape(1, C).astype(jnp.float32))

    grid = (b_pad // tile_b,)

    out_p = pl.pallas_call(
        mlp_kernel,
        out_shape=jax.ShapeDtypeStruct((b_pad, c_pad), jnp.float32),
        grid_spec=pltpu.PrefetchScalarGridSpec(
            num_scalar_prefetch=0,
            grid=grid,
            in_specs=[
                pl.BlockSpec((tile_b, D), lambda i: (i, 0)),   # x tile (pipelined)
                pl.BlockSpec((D, D), lambda i: (0, 0)),        # w1 (resident)
                pl.BlockSpec((1, D), lambda i: (0, 0)),        # b1
                pl.BlockSpec((D, c_pad), lambda i: (0, 0)),    # w2 (lane-padded)
                pl.BlockSpec((1, c_pad), lambda i: (0, 0)),    # b2 (lane-padded)
            ],
            out_specs=pl.BlockSpec((tile_b, c_pad), lambda i: (i, 0)),
        ),
        compiler_params=pltpu.CompilerParams(
            dimension_semantics=("parallel",),   # megacore-shard the batch axis
        ),
    )(x_p, w1_b, b1_f, w2_p, b2_p)

    return out_p[:B, :C]


def init_params(key, input_size=64, class_num=2):
    # Deterministic synthetic params (PyTorch nn.Linear-style uniform init).
    k1, k2, k3, k4 = jax.random.split(key, 4)
    bound1 = 1.0 / (input_size ** 0.5)
    w1 = jax.random.uniform(k1, (input_size, input_size), jnp.float32,
                            -bound1, bound1)
    b1 = jax.random.uniform(k2, (1, input_size), jnp.float32, -bound1, bound1)
    bound2 = 1.0 / (input_size ** 0.5)
    w2 = jax.random.uniform(k3, (input_size, class_num), jnp.float32,
                            -bound2, bound2)
    b2 = jax.random.uniform(k4, (1, class_num), jnp.float32, -bound2, bound2)
    return w1, b1, w2, b2


if __name__ == "__main__":
    key = jax.random.PRNGKey(0)
    k_x, k_p = jax.random.split(key)

    batch = 8
    input_size = 64
    class_num = 2

    x = jax.random.normal(k_x, (batch, input_size), jnp.float32)
    w1, b1, w2, b2 = init_params(k_p, input_size, class_num)

    out = mlp_forward(x, w1, b1, w2, b2)
    out = jax.block_until_ready(out)
    assert out.shape == (batch, class_num)

    # Reference 1: same operand precision as the kernel (bf16 MXU, f32 accum).
    h_ref = jnp.dot(x.astype(jnp.bfloat16), w1.astype(jnp.bfloat16),
                    preferred_element_type=jnp.float32) + b1
    h_ref = jnp.maximum(h_ref, 0.0)
    logits_ref = jnp.dot(h_ref.astype(jnp.bfloat16), w2.astype(jnp.bfloat16),
                         preferred_element_type=jnp.float32) + b2
    ref_bf16 = jax.nn.sigmoid(logits_ref)
    assert jnp.allclose(out, ref_bf16, atol=2e-3, rtol=2e-3), "bf16-matched ref mismatch"

    # Reference 2: pure f32 math of the original module (loose tol for bf16 operands).
    ref_f32 = jax.nn.sigmoid(jnp.maximum(x @ w1 + b1, 0.0) @ w2 + b2)
    assert jnp.allclose(out, ref_f32, atol=3e-2, rtol=3e-2), "f32 ref mismatch"

    # Also exercise the multi-step (tiled) grid path with a larger batch.
    x_big = jax.random.normal(k_x, (300, input_size), jnp.float32)
    out_big = jax.block_until_ready(mlp_forward(x_big, w1, b1, w2, b2))
    ref_big = jax.nn.sigmoid(jnp.maximum(x_big @ w1 + b1, 0.0) @ w2 + b2)
    assert out_big.shape == (300, class_num)
    assert jnp.allclose(out_big, ref_big, atol=3e-2, rtol=3e-2), "big-batch mismatch"

    print("KERNEL_OK")
</pallas_src>

<mosaic_0001>
module attributes {stable_mosaic.version = 11 : i64} {
  func.func @mlp_kernel(%arg0: i32, %arg1: memref<8x64xbf16, #tpu.memory_space<vmem>>, %arg2: memref<64x64xbf16, #tpu.memory_space<vmem>>, %arg3: memref<1x64xf32, #tpu.memory_space<vmem>>, %arg4: memref<64x128xbf16, #tpu.memory_space<vmem>>, %arg5: memref<1x128xf32, #tpu.memory_space<vmem>>, %arg6: memref<8x128xf32, #tpu.memory_space<vmem>>) attributes {dimension_semantics = [#tpu.dimension_semantics<parallel>], iteration_bounds = array<i64: 1>, scalar_prefetch = 0 : i64, scratch_operands = 0 : i64, tpu.core_type = #tpu.core_type<tc>, window_params = [{transform_indices = @transform_0, window_bounds = array<i64: 8, 64>}, {pipeline_mode = #tpu.pipeline_mode<synchronous>, transform_indices = @transform_1, window_bounds = array<i64: 64, 64>}, {pipeline_mode = #tpu.pipeline_mode<synchronous>, transform_indices = @transform_2, window_bounds = array<i64: 1, 64>}, {pipeline_mode = #tpu.pipeline_mode<synchronous>, transform_indices = @transform_3, window_bounds = array<i64: 64, 128>}, {pipeline_mode = #tpu.pipeline_mode<synchronous>, transform_indices = @transform_4, window_bounds = array<i64: 1, 128>}, {transform_indices = @transform_5, window_bounds = array<i64: 8, 128>}]} {
    %c0 = arith.constant 0 : index
    %c0_0 = arith.constant 0 : index
    %0 = vector.load %arg1[%c0, %c0_0] : memref<8x64xbf16, #tpu.memory_space<vmem>>, vector<8x64xbf16>
    %c0_1 = arith.constant 0 : index
    %c0_2 = arith.constant 0 : index
    %1 = vector.load %arg2[%c0_1, %c0_2] : memref<64x64xbf16, #tpu.memory_space<vmem>>, vector<64x64xbf16>
    %cst = arith.constant dense<0.000000e+00> : vector<8x64xf32>
    %2 = tpu.matmul %0, %1, %cst {dimension_numbers = #tpu.dot_dimension_numbers<[1], [0], [0], [1], [0, 0, 1, 1], [], []>} : vector<8x64xbf16>, vector<64x64xbf16>, vector<8x64xf32> -> vector<8x64xf32>
    %c0_3 = arith.constant 0 : index
    %c0_4 = arith.constant 0 : index
    %3 = vector.load %arg3[%c0_3, %c0_4] : memref<1x64xf32, #tpu.memory_space<vmem>>, vector<1x64xf32>
    %4 = vector.broadcast %3 : vector<1x64xf32> to vector<8x64xf32>
    %5 = arith.addf %2, %4 : vector<8x64xf32>
    %cst_5 = arith.constant 0.000000e+00 : f32
    %6 = vector.broadcast %cst_5 : f32 to vector<8x64xf32>
    %7 = arith.maximumf %5, %6 : vector<8x64xf32>
    %8 = arith.truncf %7 : vector<8x64xf32> to vector<8x64xbf16>
    %c0_6 = arith.constant 0 : index
    %c0_7 = arith.constant 0 : index
    %9 = vector.load %arg4[%c0_6, %c0_7] : memref<64x128xbf16, #tpu.memory_space<vmem>>, vector<64x128xbf16>
    %cst_8 = arith.constant dense<0.000000e+00> : vector<8x128xf32>
    %10 = tpu.matmul %8, %9, %cst_8 {dimension_numbers = #tpu.dot_dimension_numbers<[1], [0], [0], [1], [0, 0, 1, 1], [], []>} : vector<8x64xbf16>, vector<64x128xbf16>, vector<8x128xf32> -> vector<8x128xf32>
    %c0_9 = arith.constant 0 : index
    %c0_10 = arith.constant 0 : index
    %11 = vector.load %arg5[%c0_9, %c0_10] : memref<1x128xf32, #tpu.memory_space<vmem>>, vector<1x128xf32>
    %12 = vector.broadcast %11 : vector<1x128xf32> to vector<8x128xf32>
    %13 = arith.addf %10, %12 : vector<8x128xf32>
    %14 = arith.negf %13 : vector<8x128xf32>
    %15 = math.exp %14 : vector<8x128xf32>
    %cst_11 = arith.constant 1.000000e+00 : f32
    %16 = vector.broadcast %cst_11 : f32 to vector<8x128xf32>
    %17 = arith.addf %16, %15 : vector<8x128xf32>
    %18 = arith.divf %16, %17 : vector<8x128xf32>
    %c0_12 = arith.constant 0 : index
    %c0_13 = arith.constant 0 : index
    %19 = vector.load %arg6[%c0_12, %c0_13] : memref<8x128xf32, #tpu.memory_space<vmem>>, vector<8x128xf32>
    tpu.vector_store %arg6[%c0_12, %c0_13], %18 {strides = array<i32>} : memref<8x128xf32, #tpu.memory_space<vmem>>, vector<8x128xf32>,
    return
  }
  func.func @transform_0(%arg0: i32) -> (i32, i32) {
    %c0_i32 = arith.constant 0 : i32
    %c0_i32_0 = arith.constant 0 : i32
    return %arg0, %c0_i32 : i32, i32
  }
  func.func @transform_1(%arg0: i32) -> (i32, i32) {
    %c0_i32 = arith.constant 0 : i32
    %c0_i32_0 = arith.constant 0 : i32
    %c0_i32_1 = arith.constant 0 : i32
    return %c0_i32, %c0_i32_0 : i32, i32
  }
  func.func @transform_2(%arg0: i32) -> (i32, i32) {
    %c0_i32 = arith.constant 0 : i32
    %c0_i32_0 = arith.constant 0 : i32
    %c0_i32_1 = arith.constant 0 : i32
    return %c0_i32, %c0_i32_0 : i32, i32
  }
  func.func @transform_3(%arg0: i32) -> (i32, i32) {
    %c0_i32 = arith.constant 0 : i32
    %c0_i32_0 = arith.constant 0 : i32
    %c0_i32_1 = arith.constant 0 : i32
    return %c0_i32, %c0_i32_0 : i32, i32
  }
  func.func @transform_4(%arg0: i32) -> (i32, i32) {
    %c0_i32 = arith.constant 0 : i32
    %c0_i32_0 = arith.constant 0 : i32
    %c0_i32_1 = arith.constant 0 : i32
    return %c0_i32, %c0_i32_0 : i32, i32
  }
  func.func @transform_5(%arg0: i32) -> (i32, i32) {
    %c0_i32 = arith.constant 0 : i32
    %c0_i32_0 = arith.constant 0 : i32
    return %arg0, %c0_i32 : i32, i32
  }
}

</mosaic_0001>

<llo_original>
// kernel: tpu_custom_call.1
$region0: #{tpu_custom_call.1}
  #allocation0 [shape = 'u32[]', space=smem, size = 0x4, offset = 0x4, fixed_abs, tag = 'smem constant byte address 0x4 - core index']
  #allocation1 [shape = 'u32[144,128]{1,0:T(1,128)}', space=vmem, size = 0x12000, scoped, tag = 'internal scratch']
  %s0 = inlined_call_operand.hbm [shape: bf16[8,64], index: 0, kind: input, shape index: {}]
  %s1 = inlined_call_operand.hbm [shape: bf16[64,64], index: 1, kind: input, shape index: {}]
  %s2 = inlined_call_operand.vmem [shape: f32[1,64], index: 2, kind: input, shape index: {}]
  %s3 = inlined_call_operand.hbm [shape: bf16[64,128], index: 3, kind: input, shape index: {}]
  %s4 = inlined_call_operand.vmem [shape: f32[1,128], index: 4, kind: input, shape index: {}]
  %s5 = inlined_call_operand.hbm [shape: f32[8,128], index: 5, kind: output, shape index: {}]
  %s6 = sld [smem:[#allocation0]]
  $region42: #{tpu_custom_call.1} parent=0
    _
  %s8 = ssub.s32 1, %s6
  %s9 = scalar_select 0, %s8, %s6
  $region1: #{tpu_custom_call.1} parent=0
    #allocation2 [shape = 'u8[2048]{0}', space=vmem, size = 0x800, scoped, tag = 'input window, operand 0, single buffered']
    #allocation3 [shape = 's32[1]{0}', space=sflag, size = 0x4, scoped, tag = 'scoped memory for tpu_custom_call.1']
    #allocation4 [shape = 's32[1]{0}', space=sflag, size = 0x4, scoped, tag = 'scoped memory for tpu_custom_call.1']
    #allocation5 [shape = 'u8[16384]{0}', space=vmem, size = 0x4000, scoped, tag = 'input window, operand 1, single buffered']
    #allocation6 [shape = 's32[1]{0}', space=sflag, size = 0x4, scoped, tag = 'scoped memory for tpu_custom_call.1']
    #allocation7 [shape = 'u8[16384]{0}', space=vmem, size = 0x4000, scoped, tag = 'input window, operand 3, single buffered']
    #allocation8 [shape = 'u8[4096]{0}', space=vmem, size = 0x1000, scoped, tag = 'output window, operand 0, single buffered']
    %10 = vsyncpa [#allocation3], 0
    %11 = vsyncpa [#allocation6], 0
    %12 = vsyncpa [#allocation4], 0
    // Predicated region
    $region2: #{tpu_custom_call.1} parent=1 // pred_check
      _
    $region3: #{tpu_custom_call.1} parent=1 // pred_check_branch
      %14 = sbr.rel (0) target = $region5
    $region4: #{tpu_custom_call.1} parent=1 // pred_region
      %s16 = ssub.s32 64, 64
      %17 = vsyncadd [#allocation3], %s16
      %s19 = sshll.u32 [#allocation2], 4
      %s20 = int_to_ptr.vmem [resolvable:$true] %s19
      %22 = dma.hbm_to_vmem [thread:$0]  %s0, 64, %s20, [#allocation3]
    $region5: #{tpu_custom_call.1} parent=1 // pred_fallthru
      _
    // Predicated region
    $region6: #{tpu_custom_call.1} parent=1 // pred_check
      _
    $region7: #{tpu_custom_call.1} parent=1 // pred_check_branch
      %24 = sbr.rel (0) target = $region9
    $region8: #{tpu_custom_call.1} parent=1 // pred_region
      %s26 = ssub.s32 512, 512
      %27 = vsyncadd [#allocation6], %s26
      %s28 = sshll.u32 [#allocation5], 4
      %s29 = int_to_ptr.vmem [resolvable:$true] %s28
      %34 = dma.hbm_to_vmem [thread:$0]  %s1, 512, %s29, [#allocation6], 64, 64, 4
    $region9: #{tpu_custom_call.1} parent=1 // pred_fallthru
      _
    // Predicated region
    $region10: #{tpu_custom_call.1} parent=1 // pred_check
      _
    $region11: #{tpu_custom_call.1} parent=1 // pred_check_branch
      %36 = sbr.rel (0) target = $region13
    $region12: #{tpu_custom_call.1} parent=1 // pred_region
      _
    $region13: #{tpu_custom_call.1} parent=1 // pred_fallthru
      _
    // Predicated region
    $region14: #{tpu_custom_call.1} parent=1 // pred_check
      _
    $region15: #{tpu_custom_call.1} parent=1 // pred_check_branch
      %38 = sbr.rel (0) target = $region17
    $region16: #{tpu_custom_call.1} parent=1 // pred_region
      %s40 = ssub.s32 512, 512
      %41 = vsyncadd [#allocation6], %s40
      %s42 = sshll.u32 [#allocation7], 4
      %s43 = int_to_ptr.vmem [resolvable:$true] %s42
      %48 = dma.hbm_to_vmem [thread:$0]  %s3, 512, %s43, [#allocation6], 64, 64, 4
    $region17: #{tpu_custom_call.1} parent=1 // pred_fallthru
      _
    // Predicated region
    $region18: #{tpu_custom_call.1} parent=1 // pred_check
      _
    $region19: #{tpu_custom_call.1} parent=1 // pred_check_branch
      %50 = sbr.rel (0) target = $region21
    $region20: #{tpu_custom_call.1} parent=1 // pred_region
      _
    $region21: #{tpu_custom_call.1} parent=1 // pred_fallthru
      _
    // Predicated region
    $region22: #{tpu_custom_call.1} parent=1 // pred_check
      _
    $region23: #{tpu_custom_call.1} parent=1 // pred_check_branch
      %52 = sbr.rel (0) target = $region25
    $region24: #{tpu_custom_call.1} parent=1 // pred_region
      %53 = dma.done [#allocation3], 64
    $region25: #{tpu_custom_call.1} parent=1 // pred_fallthru
      _
    // Predicated region
    $region26: #{tpu_custom_call.1} parent=1 // pred_check
      _
    $region27: #{tpu_custom_call.1} parent=1 // pred_check_branch
      %55 = sbr.rel (0) target = $region29
    $region28: #{tpu_custom_call.1} parent=1 // pred_region
      %56 = dma.done [#allocation6], 512
    $region29: #{tpu_custom_call.1} parent=1 // pred_fallthru
      _
    // Predicated region
    $region30: #{tpu_custom_call.1} parent=1 // pred_check
      _
    $region31: #{tpu_custom_call.1} parent=1 // pred_check_branch
      %58 = sbr.rel (0) target = $region33
    $region32: #{tpu_custom_call.1} parent=1 // pred_region
      %59 = dma.done [#allocation6], 512
    $region33: #{tpu_custom_call.1} parent=1 // pred_fallthru
      _
    %v61 = vld [vmem:[#allocation2] sm:$0xf]
    %v62 = vld [vmem:[#allocation5] sm:$0xf]
    %v63 = vld [vmem:[#allocation5 + $0x4] sm:$0xf]
    %v64 = vld [vmem:[#allocation5 + $0x8] sm:$0xf]
    %v65 = vld [vmem:[#allocation5 + $0xc] sm:$0xf]
    %v66 = vld [vmem:[#allocation5 + $0x10] sm:$0xf]
    %v67 = vld [vmem:[#allocation5 + $0x14] sm:$0xf]
    %v68 = vld [vmem:[#allocation5 + $0x18] sm:$0xf]
    %v69 = vld [vmem:[#allocation5 + $0x1c] sm:$0xf]
    %v70 = vld [vmem:[%s2] sm:$0x1]
    %v72 = vlaneseq
    %v73 = vshrl.u32 %v72, 7
    %v74 = vsub.s32 0, %v73
    %v75 = vrot.slane %v70, %v74
    %v85 = vunpack.c.l.b16 %v62
    %v86 = vunpack.c.l.b16 %v63
    %v87 = vunpack.c.l.b16 %v64
    %v88 = vunpack.c.l.b16 %v65
    %v89 = vunpack.c.l.b16 %v66
    %v90 = vunpack.c.l.b16 %v67
    %v91 = vunpack.c.l.b16 %v68
    %v92 = vunpack.c.l.b16 %v69
    %v93 = vpack.c.b16 %v86, %v85
    %v94 = vpack.c.b16 %v88, %v87
    %v95 = vpack.c.b16 %v90, %v89
    %v96 = vpack.c.b16 %v92, %v91
    %vm101 = vcmask 523264
    %v103 = vsel %vm101, %v61, 0
    %105 = vmatprep.subr.bf16.mxu0 0
    %106 = vmatpush1.bf16.msra.mxu0 0
    %107 = vmatprep.subr.bf16.mxu0 0
    %108 = vmatpush1.bf16.msra.mxu0 0
    %109 = vmatprep.subr.bf16.mxu0 0
    %110 = vmatpush1.bf16.msra.mxu0 0
    %111 = vmatprep.subr.bf16.mxu0 0
    %112 = vmatpush1.bf16.msra.mxu0 0
    %113 = vmatprep.subr.bf16.mxu0 0
    %114 = vmatpush1.bf16.msra.mxu0 %v96
    %115 = vmatprep.subr.bf16.mxu0 0
    %116 = vmatpush1.bf16.msra.mxu0 %v95
    %117 = vmatprep.subr.bf16.mxu0 0
    %118 = vmatpush1.bf16.msra.mxu0 %v94
    %119 = vmatprep.subr.bf16.mxu0 0
    %120 = vmatpush1.bf16.msra.mxu0 %v93
    %121 = vmatprep.subr.bf16.mxu0 0
    %122 = vmatpush2.bf16.msra.mxu0 0
    %123 = vmatprep.subr.bf16.mxu0 0
    %124 = vmatpush2.bf16.msra.mxu0 0
    %125 = vmatprep.subr.bf16.mxu0 0
    %126 = vmatpush2.bf16.msra.mxu0 0
    %127 = vmatprep.subr.bf16.mxu0 0
    %128 = vmatpush2.bf16.msra.mxu0 0
    %129 = vmatprep.subr.bf16.mxu0 0
    %130 = vmatpush2.bf16.msra.mxu0 0
    %131 = vmatprep.subr.bf16.mxu0 0
    %132 = vmatpush2.bf16.msra.mxu0 0
    %133 = vmatprep.subr.bf16.mxu0 0
    %134 = vmatpush2.bf16.msra.mxu0 0
    %135 = vmatprep.subr.bf16.mxu0 0
    %136 = vmatpush2.bf16.msra.mxu0 0
    %137 = vmatprep.mubr.bf16.mxu0 0
    %138 = vmatmul.mubr.bf16.gmra.mxu0 %v103
    %v139 = vpop.f32.mrf.mxu0
    %v140 = vadd.f32 %v75, %v139
    %v141 = vpop.f32.mrf.mxu0
    %v142 = vpop.f32.mrf.mxu0
    %v143 = vpop.f32.mrf.mxu0
    %144 = vdwg.mxu0
    %v145 = vmax.f32 %v140, 0.0
    %v146 = vpack.c.bf16 %v145, %v145
    %v147 = vld [vmem:[#allocation7] sm:$0xf]
    %v148 = vld [vmem:[#allocation7 + $0x4] sm:$0xf]
    %v149 = vld [vmem:[#allocation7 + $0x8] sm:$0xf]
    %v150 = vld [vmem:[#allocation7 + $0xc] sm:$0xf]
    %v151 = vld [vmem:[#allocation7 + $0x10] sm:$0xf]
    %v152 = vld [vmem:[#allocation7 + $0x14] sm:$0xf]
    %v153 = vld [vmem:[#allocation7 + $0x18] sm:$0xf]
    %v154 = vld [vmem:[#allocation7 + $0x1c] sm:$0xf]
    %v155 = vld [vmem:[%s4] sm:$0x1]
    %v157 = vlaneseq
    %v158 = vshrl.u32 %v157, 7
    %v159 = vsub.s32 0, %v158
    %v160 = vrot.slane %v155, %v159
    %v170 = vunpack.c.l.b16 %v147
    %v171 = vunpack.c.l.b16 %v148
    %v172 = vunpack.c.l.b16 %v149
    %v173 = vunpack.c.l.b16 %v150
    %v174 = vunpack.c.l.b16 %v151
    %v175 = vunpack.c.l.b16 %v152
    %v176 = vunpack.c.l.b16 %v153
    %v177 = vunpack.c.l.b16 %v154
    %v178 = vpack.c.b16 %v171, %v170
    %v179 = vpack.c.b16 %v173, %v172
    %v180 = vpack.c.b16 %v175, %v174
    %v181 = vpack.c.b16 %v177, %v176
    %v187 = vsel %vm101, %v146, 0
    %189 = vmatprep.subr.bf16.mxu0 0
    %190 = vmatpush1.bf16.msra.mxu0 0
    %191 = vmatprep.subr.bf16.mxu0 0
    %192 = vmatpush1.bf16.msra.mxu0 0
    %193 = vmatprep.subr.bf16.mxu0 0
    %194 = vmatpush1.bf16.msra.mxu0 0
    %195 = vmatprep.subr.bf16.mxu0 0
    %196 = vmatpush1.bf16.msra.mxu0 0
    %197 = vmatprep.subr.bf16.mxu0 0
    %198 = vmatpush1.bf16.msra.mxu0 %v181
    %199 = vmatprep.subr.bf16.mxu0 0
    %200 = vmatpush1.bf16.msra.mxu0 %v180
    %201 = vmatprep.subr.bf16.mxu0 0
    %202 = vmatpush1.bf16.msra.mxu0 %v179
    %203 = vmatprep.subr.bf16.mxu0 0
    %204 = vmatpush1.bf16.msra.mxu0 %v178
    %205 = vmatprep.subr.bf16.mxu0 0
    %206 = vmatpush2.bf16.msra.mxu0 0
    %207 = vmatprep.subr.bf16.mxu0 0
    %208 = vmatpush2.bf16.msra.mxu0 0
    %209 = vmatprep.subr.bf16.mxu0 0
    %210 = vmatpush2.bf16.msra.mxu0 0
    %211 = vmatprep.subr.bf16.mxu0 0
    %212 = vmatpush2.bf16.msra.mxu0 0
    %213 = vmatprep.subr.bf16.mxu0 0
    %214 = vmatpush2.bf16.msra.mxu0 0
    %215 = vmatprep.subr.bf16.mxu0 0
    %216 = vmatpush2.bf16.msra.mxu0 0
    %217 = vmatprep.subr.bf16.mxu0 0
    %218 = vmatpush2.bf16.msra.mxu0 0
    %219 = vmatprep.subr.bf16.mxu0 0
    %220 = vmatpush2.bf16.msra.mxu0 0
    %221 = vmatprep.mubr.bf16.mxu0 0
    %222 = vmatmul.mubr.bf16.gmra.mxu0 %v187
    %v223 = vpop.f32.mrf.mxu0
    %v224 = vadd.f32 %v160, %v223
    %v225 = vpop.f32.mrf.mxu0
    %v226 = vpop.f32.mrf.mxu0
    %v227 = vpop.f32.mrf.mxu0
    %228 = vdwg.mxu0
    %v229 = vxor.u32 %v224, 2147483648
    %v230 = vmul.f32 %v229, 1.442695
    %v231 = vpow.pop %v230
    %v232 = vadd.f32 %v231, 1.0
    %v233 = vrcp.pop %v232
    %v234 = vmul.f32 1.0, %v233
    %235 = vst [vmem:[#allocation8] sm:$0xff] %v234
    // Predicated region
    $region34: #{tpu_custom_call.1} parent=1 // pred_check
      _
    $region35: #{tpu_custom_call.1} parent=1 // pred_check_branch
      %237 = sbr.rel (0) target = $region37
    $region36: #{tpu_custom_call.1} parent=1 // pred_region
      %s239 = ssub.s32 128, 128
      %240 = vsyncadd [#allocation4], %s239
      %s242 = sshll.u32 [#allocation8], 4
      %s243 = int_to_ptr.vmem [resolvable:$true] %s242
      %245 = dma.vmem_to_hbm [thread:$0]  %s243, 128, %s5, [#allocation4]
    $region37: #{tpu_custom_call.1} parent=1 // pred_fallthru
      _
    // Predicated region
    $region38: #{tpu_custom_call.1} parent=1 // pred_check
      _
    $region39: #{tpu_custom_call.1} parent=1 // pred_check_branch
      %247 = sbr.rel (0) target = $region41
    $region40: #{tpu_custom_call.1} parent=1 // pred_region
      %248 = dma.done [#allocation4], 128
    $region41: #{tpu_custom_call.1} parent=1 // pred_fallthru
      _
    %249 = vsyncpa [#allocation3], 1
    %250 = vsyncpa [#allocation6], 1
    %251 = vsyncpa [#allocation4], 1

</llo_original>
